<compile_context>
chip_gen: v5e
topology: v5e:2x2
jax: 0.10.0
libtpu: 0.0.40
codegen_flags: <defaults>
</compile_context>

<pallas_src>
import functools

import jax
import jax.numpy as jnp
from jax import lax
from jax.experimental import pallas as pl
from jax.experimental.pallas import tpu as pltpu  # noqa: F401  (TPU backend)

# ----------------------------- static config --------------------------------
EMB_SIZE = 32      # embeddings_size
CLASS_NUMS = 16    # class_nums
BATCH = 8
MARGIN = 0.35      # additive cosine margin (CosFace)
S = 30.0           # scale

LANE = 128         # TPU lane width: class dim is kept pre-padded to this


# ------------------------------- kernel --------------------------------------
def cosface_kernel(emb_ref, w_ref, lab_ref, out_ref, *, margin, s):
    emb = emb_ref[...]                      # (B, E)      f32
    w = w_ref[...]                          # (E, C_pad)  f32 (zero-padded cols)
    lab = lab_ref[...]                      # (B, 1)      i32

    # F.normalize(identity_weights, p=2), default dim=1: L2-normalize each row
    # (each embedding dimension across classes).  Zero pad columns do not
    # perturb the row sums.  rsqrt rides the EUP slot.
    inv_norm = lax.rsqrt(jnp.maximum(jnp.sum(w * w, axis=1, keepdims=True),
                                     1e-24))
    w_n = w * inv_norm

    # cos_theta = embeddings @ w_norm, clamped to [-1, 1]   (single MXU push)
    cos_theta = jnp.dot(emb, w_n, preferred_element_type=jnp.float32)
    cos_theta = jnp.clip(cos_theta, -1.0, 1.0)

    # (one_hot*(cos - m) + (1-one_hot)*cos) * s  ==  where(c==label, cos*s - m*s, cos*s)
    # Labels are < C, so zero-weight pad columns never receive the margin and
    # stay exactly 0.0 in the output.
    col = lax.broadcasted_iota(jnp.int32, cos_theta.shape, 1)   # (B, C_pad)
    cos_s = cos_theta * s
    out_ref[...] = jnp.where(col == lab, cos_s - (margin * s), cos_s)


# ------------------------------- wrapper --------------------------------------
def _cosface_pallas(embeddings, identity_weights_padded, label2d, margin, s):
    """Hot path: exactly one pallas_call, no surrounding pad/slice/reshape.

    Args:
      embeddings:              (B, E) f32
      identity_weights_padded: (E, C_pad) f32, C_pad a multiple of 128,
                               pad columns zero (created once at init).
      label2d:                 (B, 1) int32, values in [0, C).
    Returns:
      (B, C_pad) f32 logits.  Columns >= C are exactly 0.0 and must be
      masked by the consumer (e.g. to -inf before softmax).
    """
    B, E = embeddings.shape
    E2, c_pad = identity_weights_padded.shape
    assert E2 == E and c_pad % LANE == 0

    kernel = functools.partial(cosface_kernel, margin=float(margin),
                               s=float(s))
    return pl.pallas_call(
        kernel,
        out_shape=jax.ShapeDtypeStruct((B, c_pad), jnp.float32),
        # Tiny problem (~21 KB working set): whole-array blocks, no grid.
        in_specs=[
            pl.BlockSpec((B, E), lambda: (0, 0)),
            pl.BlockSpec((E, c_pad), lambda: (0, 0)),
            pl.BlockSpec((B, 1), lambda: (0, 0)),
        ],
        out_specs=pl.BlockSpec((B, c_pad), lambda: (0, 0)),
    )(embeddings, identity_weights_padded, label2d)


cosface_forward = jax.jit(_cosface_pallas, static_argnames=("margin", "s"))


# --------------------------- pure-JAX reference -------------------------------
def cosface_reference(embeddings, identity_weights, label, *, margin=MARGIN,
                      s=S):
    w = identity_weights
    w_n = w / jnp.maximum(jnp.linalg.norm(w, axis=1, keepdims=True), 1e-12)
    cos_theta = jnp.clip(embeddings @ w_n, -1.0, 1.0)
    cos_theta_m = cos_theta - margin
    one_hot = jax.nn.one_hot(label, cos_theta.shape[1], dtype=jnp.float32)
    out = one_hot * cos_theta_m + (1.0 - one_hot) * cos_theta
    return out * s


# -------------------------- deterministic init --------------------------------
def init_identity_weights_padded(key, embeddings_size, class_nums):
    """torch: uniform_(-1,1).renorm_(2,1,1e-05).mul_(1e5); padded ONCE to
    the next 128-lane multiple (exactly 128 here) so the kernel input/output
    are lane-dense with no per-call pad op."""
    w = jax.random.uniform(key, (embeddings_size, class_nums),
                           minval=-1.0, maxval=1.0, dtype=jnp.float32)
    col_norm = jnp.linalg.norm(w, axis=0, keepdims=True)       # renorm dim=1
    scale = jnp.minimum(1.0, 1e-05 / jnp.maximum(col_norm, 1e-30))
    w = w * scale * 1e5
    c_pad = pl.cdiv(class_nums, LANE) * LANE                   # exactly 128
    return jnp.pad(w, ((0, 0), (0, c_pad - class_nums)))


if __name__ == "__main__":
    key = jax.random.PRNGKey(0)
    k_w, k_emb, k_lab = jax.random.split(key, 3)

    # Parameter is stored pre-padded (E, 128); pad happens once here, not per call.
    identity_weights_padded = init_identity_weights_padded(k_w, EMB_SIZE,
                                                           CLASS_NUMS)
    embeddings = jax.random.normal(k_emb, (BATCH, EMB_SIZE), dtype=jnp.float32)
    # Label created already in kernel-ready shape/dtype: (B, 1) int32.
    label2d = jax.random.randint(k_lab, (BATCH, 1), 0, CLASS_NUMS,
                                 dtype=jnp.int32)

    out_padded = cosface_forward(embeddings, identity_weights_padded, label2d,
                                 margin=MARGIN, s=S)
    out_padded = jax.block_until_ready(out_padded)
    assert out_padded.shape == (BATCH, LANE)

    # Correctness check vs. pure-JAX reference on the real class columns.
    ref = cosface_reference(embeddings,
                            identity_weights_padded[:, :CLASS_NUMS],
                            label2d[:, 0], margin=MARGIN, s=S)
    assert jnp.allclose(out_padded[:, :CLASS_NUMS], ref,
                        rtol=1e-5, atol=1e-5), "mismatch vs reference"
    # Pad-column logits are exactly 0.0 (zero weight columns, label < C);
    # downstream consumers must mask them.
    assert jnp.all(out_padded[:, CLASS_NUMS:] == 0.0)

    print("KERNEL_OK")
</pallas_src>

<mosaic_0001>
module attributes {stable_mosaic.version = 11 : i64} {
  func.func @cosface_kernel(%arg0: memref<8x32xf32, #tpu.memory_space<vmem>>, %arg1: memref<32x128xf32, #tpu.memory_space<vmem>>, %arg2: memref<8x1xi32, #tpu.memory_space<vmem>>, %arg3: memref<8x128xf32, #tpu.memory_space<vmem>>) attributes {dimension_semantics = [], scalar_prefetch = 0 : i64, scratch_operands = 0 : i64, tpu.core_type = #tpu.core_type<tc>} {
    %c0 = arith.constant 0 : index
    %c0_0 = arith.constant 0 : index
    %0 = vector.load %arg0[%c0, %c0_0] : memref<8x32xf32, #tpu.memory_space<vmem>>, vector<8x32xf32>
    %c0_1 = arith.constant 0 : index
    %c0_2 = arith.constant 0 : index
    %1 = vector.load %arg1[%c0_1, %c0_2] : memref<32x128xf32, #tpu.memory_space<vmem>>, vector<32x128xf32>
    %c0_3 = arith.constant 0 : index
    %c0_4 = arith.constant 0 : index
    %2 = vector.load %arg2[%c0_3, %c0_4] : memref<8x1xi32, #tpu.memory_space<vmem>>, vector<8x1xi32>
    %3 = arith.mulf %1, %1 : vector<32x128xf32>
    %cst = arith.constant dense<0.000000e+00> : vector<32xf32>
    %4 = vector.multi_reduction <add>, %3, %cst [1] : vector<32x128xf32> to vector<32xf32>
    %5 = vector.shape_cast %4 : vector<32xf32> to vector<32x1xf32>
    %cst_5 = arith.constant 1.000000e-24 : f32
    %6 = vector.broadcast %cst_5 : f32 to vector<32x1xf32>
    %7 = arith.maximumf %5, %6 : vector<32x1xf32>
    %8 = math.rsqrt %7 : vector<32x1xf32>
    %9 = vector.broadcast %8 : vector<32x1xf32> to vector<32x128xf32>
    %10 = arith.mulf %1, %9 : vector<32x128xf32>
    %cst_6 = arith.constant dense<0.000000e+00> : vector<8x128xf32>
    %11 = tpu.matmul %0, %10, %cst_6 {dimension_numbers = #tpu.dot_dimension_numbers<[1], [0], [0], [1], [0, 0, 1, 1], [], []>} : vector<8x32xf32>, vector<32x128xf32>, vector<8x128xf32> -> vector<8x128xf32>
    %cst_7 = arith.constant -1.000000e+00 : f32
    %cst_8 = arith.constant 1.000000e+00 : f32
    %12 = vector.broadcast %cst_7 : f32 to vector<8x128xf32>
    %13 = arith.maximumf %12, %11 : vector<8x128xf32>
    %14 = vector.broadcast %cst_8 : f32 to vector<8x128xf32>
    %15 = arith.minimumf %14, %13 : vector<8x128xf32>
    %16 = tpu.iota {dimensions = array<i32: 1>} : vector<8x128xi32>
    %cst_9 = arith.constant 3.000000e+01 : f32
    %17 = vector.broadcast %cst_9 : f32 to vector<8x128xf32>
    %18 = arith.mulf %15, %17 : vector<8x128xf32>
    %19 = vector.broadcast %2 : vector<8x1xi32> to vector<8x128xi32>
    %20 = arith.cmpi eq, %16, %19 : vector<8x128xi32>
    %cst_10 = arith.constant 1.050000e+01 : f32
    %21 = vector.broadcast %cst_10 : f32 to vector<8x128xf32>
    %22 = arith.subf %18, %21 : vector<8x128xf32>
    %23 = arith.select %20, %22, %18 : vector<8x128xi1>, vector<8x128xf32>
    %c0_11 = arith.constant 0 : index
    %c0_12 = arith.constant 0 : index
    %24 = vector.load %arg3[%c0_11, %c0_12] : memref<8x128xf32, #tpu.memory_space<vmem>>, vector<8x128xf32>
    tpu.vector_store %arg3[%c0_11, %c0_12], %23 {strides = array<i32>} : memref<8x128xf32, #tpu.memory_space<vmem>>, vector<8x128xf32>,
    return
  }
}

</mosaic_0001>

<llo_original>
// kernel: _cosface_pallas.1
$region0: #{_cosface_pallas.1}
  #allocation0 [shape = 'u32[]', space=smem, size = 0x4, offset = 0x4, fixed_abs, tag = 'smem constant byte address 0x4 - core index']
  #allocation1 [shape = 'u32[72,128]{1,0:T(1,128)}', space=vmem, size = 0x9000, scoped, tag = 'internal scratch']
  %s0 = inlined_call_operand.vmem [shape: f32[8,32], index: 0, kind: input, shape index: {}]
  %s1 = inlined_call_operand.hbm [shape: f32[32,128], index: 1, kind: input, shape index: {}]
  %s2 = inlined_call_operand.vmem [shape: s32[8,1], index: 2, kind: input, shape index: {}]
  %s3 = inlined_call_operand.hbm [shape: f32[8,128], index: 3, kind: output, shape index: {}]
  %s4 = sld [smem:[#allocation0]]
  $region26: #{_cosface_pallas.1} parent=0
    _
  %s6 = ssub.s32 1, %s4
  %s7 = scalar_select 0, %s6, %s4
  $region1: #{_cosface_pallas.1} parent=0
    #allocation2 [shape = 'u8[16384]{0}', space=vmem, size = 0x4000, scoped, tag = 'input window, operand 1, single buffered']
    #allocation3 [shape = 's32[1]{0}', space=sflag, size = 0x4, scoped, tag = 'scoped memory for _cosface_pallas.1']
    #allocation4 [shape = 's32[1]{0}', space=sflag, size = 0x4, scoped, tag = 'scoped memory for _cosface_pallas.1']
    #allocation5 [shape = 'u8[4096]{0}', space=vmem, size = 0x1000, scoped, tag = 'output window, operand 0, single buffered']
    %8 = vsyncpa [#allocation3], 0
    %9 = vsyncpa [#allocation4], 0
    // Predicated region
    $region2: #{_cosface_pallas.1} parent=1 // pred_check
      _
    $region3: #{_cosface_pallas.1} parent=1 // pred_check_branch
      %11 = sbr.rel (0) target = $region5
    $region4: #{_cosface_pallas.1} parent=1 // pred_region
      _
    $region5: #{_cosface_pallas.1} parent=1 // pred_fallthru
      _
    // Predicated region
    $region6: #{_cosface_pallas.1} parent=1 // pred_check
      _
    $region7: #{_cosface_pallas.1} parent=1 // pred_check_branch
      %13 = sbr.rel (0) target = $region9
    $region8: #{_cosface_pallas.1} parent=1 // pred_region
      %15 = vsyncadd [#allocation3], 0
      %s16 = sshll.u32 %s1, 4
      %s17 = int_to_ptr.hbm [resolvable:$true] %s16
      %s18 = sshll.u32 [#allocation2], 4
      %s19 = int_to_ptr.vmem [resolvable:$true] %s18
      %24 = dma.hbm_to_vmem [thread:$0]  %s17, 512, %s19, [#allocation3], 128, 128, 8
    $region9: #{_cosface_pallas.1} parent=1 // pred_fallthru
      _
    // Predicated region
    $region10: #{_cosface_pallas.1} parent=1 // pred_check
      _
    $region11: #{_cosface_pallas.1} parent=1 // pred_check_branch
      %26 = sbr.rel (0) target = $region13
    $region12: #{_cosface_pallas.1} parent=1 // pred_region
      _
    $region13: #{_cosface_pallas.1} parent=1 // pred_fallthru
      _
    // Predicated region
    $region14: #{_cosface_pallas.1} parent=1 // pred_check
      _
    $region15: #{_cosface_pallas.1} parent=1 // pred_check_branch
      %28 = sbr.rel (0) target = $region17
    $region16: #{_cosface_pallas.1} parent=1 // pred_region
      %30 = dma.done [#allocation3], 512
    $region17: #{_cosface_pallas.1} parent=1 // pred_fallthru
      _
    %v31 = vld [vmem:[%s0] sm:$0xff]
    %v32 = vld [vmem:[#allocation2] sm:$0xff]
    %v33 = vld [vmem:[#allocation2 + $0x8] sm:$0xff]
    %v34 = vld [vmem:[#allocation2 + $0x10] sm:$0xff]
    %v35 = vld [vmem:[#allocation2 + $0x18] sm:$0xff]
    %v36 = vld [vmem:[%s2] sm:$0xff]
    %v37 = vmul.f32 %v32, %v32
    %v38 = vmul.f32 %v33, %v33
    %v39 = vmul.f32 %v34, %v34
    %v40 = vmul.f32 %v35, %v35
    %41 = vadd.xlane.f32.xlu0 %v37
    %v42 = vpop.xlane.xlu0 %41
    %43 = vadd.xlane.f32.xlu0 %v38
    %v44 = vpop.xlane.xlu0 %43
    %45 = vadd.xlane.f32.xlu0 %v39
    %v46 = vpop.xlane.xlu0 %45
    %47 = vadd.xlane.f32.xlu0 %v40
    %v48 = vpop.xlane.xlu0 %47
    %v49 = vmax.f32 %v42, 1e-24
    %v50 = vmax.f32 %v44, 1e-24
    %v51 = vmax.f32 %v46, 1e-24
    %v52 = vmax.f32 %v48, 1e-24
    %v53 = vrsqrt.pop %v49
    %v54 = vmul.f32 %v53, %v49
    %v55 = vmul.f32 %v54, %v53
    %v56 = vmul.f32 0.5, %v55
    %v57 = vsub.f32 1.5, %v56
    %v58 = vmul.f32 %v53, %v57
    %vm59 = vweird.f32 %v49
    %vm60 = vweird.f32 %v53
    %vm61 = vmor %vm59, %vm60
    %v62 = vsel %vm61, %v53, %v58
    %v63 = vrsqrt.pop %v50
    %v64 = vmul.f32 %v63, %v50
    %v65 = vmul.f32 %v64, %v63
    %v66 = vmul.f32 0.5, %v65
    %v67 = vsub.f32 1.5, %v66
    %v68 = vmul.f32 %v63, %v67
    %vm69 = vweird.f32 %v50
    %vm70 = vweird.f32 %v63
    %vm71 = vmor %vm69, %vm70
    %v72 = vsel %vm71, %v63, %v68
    %v73 = vrsqrt.pop %v51
    %v74 = vmul.f32 %v73, %v51
    %v75 = vmul.f32 %v74, %v73
    %v76 = vmul.f32 0.5, %v75
    %v77 = vsub.f32 1.5, %v76
    %v78 = vmul.f32 %v73, %v77
    %vm79 = vweird.f32 %v51
    %vm80 = vweird.f32 %v73
    %vm81 = vmor %vm79, %vm80
    %v82 = vsel %vm81, %v73, %v78
    %v83 = vrsqrt.pop %v52
    %v84 = vmul.f32 %v83, %v52
    %v85 = vmul.f32 %v84, %v83
    %v86 = vmul.f32 0.5, %v85
    %v87 = vsub.f32 1.5, %v86
    %v88 = vmul.f32 %v83, %v87
    %vm89 = vweird.f32 %v52
    %vm90 = vweird.f32 %v83
    %vm91 = vmor %vm89, %vm90
    %v92 = vsel %vm91, %v83, %v88
    %v93 = vmul.f32 %v32, %v62
    %v94 = vmul.f32 %v33, %v72
    %v95 = vmul.f32 %v34, %v82
    %v96 = vmul.f32 %v35, %v92
    %vm97 = vcmask 261120
    %v99 = vsel %vm97, %v31, 0
    %101 = vmatpush.msra.mxu0 0.0
    %102 = vmatpush.msra.mxu0 0.0
    %103 = vmatpush.msra.mxu0 0.0
    %104 = vmatpush.msra.mxu0 0.0
    %105 = vmatpush.msra.mxu0 0.0
    %106 = vmatpush.msra.mxu0 0.0
    %107 = vmatpush.msra.mxu0 0.0
    %108 = vmatpush.msra.mxu0 0.0
    %109 = vmatpush.msra.mxu0 0.0
    %110 = vmatpush.msra.mxu0 0.0
    %111 = vmatpush.msra.mxu0 0.0
    %112 = vmatpush.msra.mxu0 0.0
    %113 = vmatpush.msra.mxu0 %v96
    %114 = vmatpush.msra.mxu0 %v95
    %115 = vmatpush.msra.mxu0 %v94
    %116 = vmatpush.msra.mxu0 %v93
    %117 = vmatmul.f32.gmra.mxu0 %v99
    %v118 = vpop.f32.mrf.mxu0
    %v119 = vadd.f32 0.0, %v118
    %120 = vdwg.mxu0
    %v121 = vmax.f32 %v119, -1.0
    %v122 = vmin.f32 %v121, 1.0
    %v123 = vlaneseq
    %v124 = vand.u32 %v123, 127
    %v125 = vmul.f32 %v122, 30.0
    %126 = vset.pattern.permute.xlu0 0
    %127 = vperm.xlu0 %126, %v36
    %v128 = vpop.permute.xlu0 %127
    %vm129 = vcmp.eq.s32.totalorder %v124, %v128
    %v130 = vsub.f32 %v125, 10.5
    %v131 = vsel %vm129, %v130, %v125
    %132 = vst [vmem:[#allocation5] sm:$0xff] %v131
    // Predicated region
    $region18: #{_cosface_pallas.1} parent=1 // pred_check
      _
    $region19: #{_cosface_pallas.1} parent=1 // pred_check_branch
      %134 = sbr.rel (0) target = $region21
    $region20: #{_cosface_pallas.1} parent=1 // pred_region
      %136 = vsyncadd [#allocation4], 0
      %s138 = sshll.u32 [#allocation5], 4
      %s139 = int_to_ptr.vmem [resolvable:$true] %s138
      %s140 = sshll.u32 %s3, 4
      %s141 = int_to_ptr.hbm [resolvable:$true] %s140
      %143 = dma.vmem_to_hbm [thread:$0]  %s139, 128, %s141, [#allocation4]
    $region21: #{_cosface_pallas.1} parent=1 // pred_fallthru
      _
    // Predicated region
    $region22: #{_cosface_pallas.1} parent=1 // pred_check
      _
    $region23: #{_cosface_pallas.1} parent=1 // pred_check_branch
      %145 = sbr.rel (0) target = $region25
    $region24: #{_cosface_pallas.1} parent=1 // pred_region
      %147 = dma.done [#allocation4], 128
    $region25: #{_cosface_pallas.1} parent=1 // pred_fallthru
      _
    %148 = vsyncpa [#allocation3], 1
    %149 = vsyncpa [#allocation4], 1

</llo_original>
